<compile_context>
chip_gen: v7x
topology: tpu7x:2x2x1
jax: 0.10.0
libtpu: 0.0.40
codegen_flags: <defaults>
</compile_context>

<pallas_src>
import functools

import jax
import jax.numpy as jnp
from jax.experimental import pallas as pl
from jax.experimental.pallas import tpu as pltpu

CHANNEL_DIVISIBLE = 8   # MyNetwork.CHANNEL_DIVISIBLE in the reference repo


def make_divisible(v, divisor, min_val=None):
    if min_val is None:
        min_val = divisor
    new_v = max(min_val, int(v + divisor / 2) // divisor * divisor)
    if new_v < 0.9 * v:
        new_v += divisor
    return new_v


def _tuning_for_backend():
    """Returns (target_block_bytes, vmem_limit_bytes, min_grid_steps)."""
    try:
        kind = jax.devices()[0].device_kind.lower()
    except Exception:
        kind = ""
    if ("v7" in kind) or ("tpu7" in kind) or ("7x" in kind):
        # 2 TCs/chip, 64 MiB VMEM, ~3.2 TB/s: bigger blocks (amortize the
        # ~0.35us step overhead), keep 2x(in+out) buffers well under 64 MiB,
        # and force >= 2 grid steps so both TensorCores are used.
        return 8 << 20, 48 << 20, 2
    if "v6" in kind:
        # 128 MiB VMEM, ~1.3-1.4 TB/s: 8 MiB blocks, plenty of headroom.
        return 8 << 20, 48 << 20, 1
    # v5e / unknown: 4 MiB blocks already sit on the ~0.82 TB/s roofline; the
    # 32 MiB override is still needed past the 16 MiB scoped default.
    return 4 << 20, 32 << 20, 1


def se_kernel(x_ref, w1_ref, b1_ref, w2_ref, b2_ref, o_ref, *, inv_hw):
    # x_ref/o_ref: (nb, C, HW); w1: (C, mid); b1: (1, mid); w2: (mid, C); b2: (1, C)
    x = x_ref[...]                                            # (nb, C, HW)
    # Global average pool over the spatial lane axis.  Accumulate in f32 via
    # the reduction dtype (no full f32 temporary of the tile for bf16 inputs).
    y = jnp.sum(x, axis=2, dtype=jnp.float32) * inv_hw        # (nb, C)
    # Batched 1x1 conv "reduce" + bias + ReLU6.
    h = jnp.dot(y, w1_ref[...], preferred_element_type=jnp.float32) + b1_ref[...]
    h = jnp.clip(h, 0.0, 6.0)                                 # (nb, mid)
    # Batched 1x1 conv "expand" + bias + Hsigmoid: relu6(x + 3) / 6.
    s = jnp.dot(h, w2_ref[...], preferred_element_type=jnp.float32) + b2_ref[...]
    s = jnp.clip(s + 3.0, 0.0, 6.0) * (1.0 / 6.0)             # (nb, C)
    # Channel-wise re-weighting; gate cast to x.dtype (no f32 promotion of x).
    o_ref[...] = x * s.astype(x.dtype)[:, :, None]


def se_module_forward(x_nchw, w_reduce, b_reduce, w_expand, b_expand,
                      block_batch=None):
    """x_nchw: (N, C, H, W). Weights follow PyTorch Conv2d 1x1 layout:
       w_reduce: (mid, C, 1, 1), b_reduce: (mid,),
       w_expand: (C, mid, 1, 1), b_expand: (C,)."""
    N, C, H, W = x_nchw.shape
    mid = w_reduce.shape[0]
    HW = H * W

    # No spatial pad: block last dim == full HW (exempt from the 128 rule).
    x = x_nchw.reshape(N, C, HW)

    target_bytes, vmem_limit, min_steps = _tuning_for_backend()
    per_image_bytes = C * HW * x.dtype.itemsize

    if block_batch is None:
        # Batch rows per block: big enough to amortize per-step overhead,
        # capped so the grid has >= min_steps steps (v7x: feed both TCs).
        nb = max(1, min(N, target_bytes // max(1, per_image_bytes)))
        if min_steps > 1 and N >= min_steps:
            nb = min(nb, -(-N // min_steps))      # ceil(N / min_steps)
    else:
        nb = max(1, min(N, int(block_batch)))
    # Ragged last block (nb need not divide N): each batch row's output only
    # depends on that row's input, so Pallas' boundary-block handling is safe.
    grid = (pl.cdiv(N, nb),)

    # Tiny, grid-constant parameters: f32, pre-transposed to (in, out) layout.
    w1 = w_reduce.reshape(mid, C).T.astype(jnp.float32)       # (C, mid)
    w2 = w_expand.reshape(C, mid).T.astype(jnp.float32)       # (mid, C)
    b1 = b_reduce.reshape(1, mid).astype(jnp.float32)
    b2 = b_expand.reshape(1, C).astype(jnp.float32)

    const = pl.Buffered(1)   # grid-constant params: single-buffered
    kernel = functools.partial(se_kernel, inv_hw=float(1.0 / HW))

    out = pl.pallas_call(
        kernel,
        out_shape=jax.ShapeDtypeStruct((N, C, HW), x.dtype),
        grid_spec=pltpu.PrefetchScalarGridSpec(
            num_scalar_prefetch=0,
            grid=grid,
            in_specs=[
                pl.BlockSpec((nb, C, HW), lambda n: (n, 0, 0)),
                pl.BlockSpec((C, mid), lambda n: (0, 0), pipeline_mode=const),
                pl.BlockSpec((1, mid), lambda n: (0, 0), pipeline_mode=const),
                pl.BlockSpec((mid, C), lambda n: (0, 0), pipeline_mode=const),
                pl.BlockSpec((1, C), lambda n: (0, 0), pipeline_mode=const),
            ],
            out_specs=pl.BlockSpec((nb, C, HW), lambda n: (n, 0, 0)),
        ),
        compiler_params=pltpu.CompilerParams(
            dimension_semantics=("parallel",),
            vmem_limit_bytes=vmem_limit,
        ),
    )(x, w1, b1, w2, b2)

    return out.reshape(N, C, H, W)


def se_module_reference(x, w_reduce, b_reduce, w_expand, b_expand):
    """Plain-JAX reference mirroring the PyTorch forward."""
    mid = w_reduce.shape[0]
    C = x.shape[1]
    y = x.mean(axis=3, keepdims=True).mean(axis=2, keepdims=True)   # (N, C, 1, 1)
    y = jnp.einsum("nchw,mc->nmhw", y, w_reduce.reshape(mid, C)) + b_reduce[None, :, None, None]
    y = jnp.clip(y, 0.0, 6.0)
    y = jnp.einsum("nmhw,cm->nchw", y, w_expand.reshape(C, mid)) + b_expand[None, :, None, None]
    y = jnp.clip(y + 3.0, 0.0, 6.0) / 6.0
    return x * y


if __name__ == "__main__":
    # SEModule(channel=16) -> num_mid = make_divisible(16 // 4, 8) = 8
    channel = 16
    reduction = 4
    num_mid = make_divisible(channel // reduction, divisor=CHANNEL_DIVISIBLE)

    key = jax.random.PRNGKey(0)
    kx, k1, k2, k3, k4 = jax.random.split(key, 5)
    # Deterministic synthetic parameters (Conv2d 1x1 layouts).
    w_reduce = jax.random.normal(k1, (num_mid, channel, 1, 1), dtype=jnp.float32) * 0.1
    b_reduce = jax.random.normal(k2, (num_mid,), dtype=jnp.float32) * 0.1
    w_expand = jax.random.normal(k3, (channel, num_mid, 1, 1), dtype=jnp.float32) * 0.1
    b_expand = jax.random.normal(k4, (channel,), dtype=jnp.float32) * 0.1

    # Case 1: H*W multiple of 128 (16x16 = 256), default blocking.
    # Case 2: H*W NOT a multiple of 128 (14x14 = 196) -> masked stores, no pad.
    # Case 3: batch not divisible by the block -> ragged last grid step.
    cases = [
        dict(N=2, H=16, W=16, block_batch=None),
        dict(N=2, H=14, W=14, block_batch=None),
        dict(N=3, H=14, W=14, block_batch=2),
    ]
    for case in cases:
        N, H, W = case["N"], case["H"], case["W"]
        x = jax.random.normal(kx, (N, channel, H, W), dtype=jnp.float32)
        out = jax.block_until_ready(
            se_module_forward(x, w_reduce, b_reduce, w_expand, b_expand,
                              block_batch=case["block_batch"]))
        ref = se_module_reference(x, w_reduce, b_reduce, w_expand, b_expand)
        assert out.shape == (N, channel, H, W)
        assert jnp.allclose(out, ref, atol=1e-5, rtol=1e-5), \
            f"mismatch vs reference at N={N}, H={H}, W={W}"

    print("KERNEL_OK")
</pallas_src>

<mosaic_0001>
module attributes {stable_mosaic.version = 11 : i64} {
  func.func @se_kernel(%arg0: i32, %arg1: memref<2x16x256xf32, #tpu.memory_space<vmem>>, %arg2: memref<16x8xf32, #tpu.memory_space<vmem>>, %arg3: memref<1x8xf32, #tpu.memory_space<vmem>>, %arg4: memref<8x16xf32, #tpu.memory_space<vmem>>, %arg5: memref<1x16xf32, #tpu.memory_space<vmem>>, %arg6: memref<2x16x256xf32, #tpu.memory_space<vmem>>) attributes {dimension_semantics = [#tpu.dimension_semantics<parallel>], iteration_bounds = array<i64: 1>, scalar_prefetch = 0 : i64, scratch_operands = 0 : i64, tpu.core_type = #tpu.core_type<tc>, window_params = [{transform_indices = @transform_0, window_bounds = array<i64: 2, 16, 256>}, {pipeline_mode = #tpu.pipeline_mode<synchronous>, transform_indices = @transform_1, window_bounds = array<i64: 16, 8>}, {pipeline_mode = #tpu.pipeline_mode<synchronous>, transform_indices = @transform_2, window_bounds = array<i64: 1, 8>}, {pipeline_mode = #tpu.pipeline_mode<synchronous>, transform_indices = @transform_3, window_bounds = array<i64: 8, 16>}, {pipeline_mode = #tpu.pipeline_mode<synchronous>, transform_indices = @transform_4, window_bounds = array<i64: 1, 16>}, {transform_indices = @transform_5, window_bounds = array<i64: 2, 16, 256>}]} {
    %c0 = arith.constant 0 : index
    %c0_0 = arith.constant 0 : index
    %c0_1 = arith.constant 0 : index
    %0 = vector.load %arg1[%c0, %c0_0, %c0_1] : memref<2x16x256xf32, #tpu.memory_space<vmem>>, vector<2x16x256xf32>
    %cst = arith.constant dense<0.000000e+00> : vector<2x16xf32>
    %1 = vector.multi_reduction <add>, %0, %cst [2] : vector<2x16x256xf32> to vector<2x16xf32>
    %cst_2 = arith.constant 3.906250e-03 : f32
    %2 = vector.broadcast %cst_2 : f32 to vector<2x16xf32>
    %3 = arith.mulf %1, %2 : vector<2x16xf32>
    %c0_3 = arith.constant 0 : index
    %c0_4 = arith.constant 0 : index
    %4 = vector.load %arg2[%c0_3, %c0_4] : memref<16x8xf32, #tpu.memory_space<vmem>>, vector<16x8xf32>
    %cst_5 = arith.constant dense<0.000000e+00> : vector<2x8xf32>
    %5 = tpu.matmul %3, %4, %cst_5 {dimension_numbers = #tpu.dot_dimension_numbers<[1], [0], [0], [1], [0, 0, 1, 1], [], []>} : vector<2x16xf32>, vector<16x8xf32>, vector<2x8xf32> -> vector<2x8xf32>
    %c0_6 = arith.constant 0 : index
    %c0_7 = arith.constant 0 : index
    %6 = vector.load %arg3[%c0_6, %c0_7] : memref<1x8xf32, #tpu.memory_space<vmem>>, vector<1x8xf32>
    %7 = vector.broadcast %6 : vector<1x8xf32> to vector<2x8xf32>
    %8 = arith.addf %5, %7 : vector<2x8xf32>
    %cst_8 = arith.constant 0.000000e+00 : f32
    %cst_9 = arith.constant 6.000000e+00 : f32
    %9 = vector.broadcast %cst_8 : f32 to vector<2x8xf32>
    %10 = arith.maximumf %9, %8 : vector<2x8xf32>
    %11 = vector.broadcast %cst_9 : f32 to vector<2x8xf32>
    %12 = arith.minimumf %11, %10 : vector<2x8xf32>
    %c0_10 = arith.constant 0 : index
    %c0_11 = arith.constant 0 : index
    %13 = vector.load %arg4[%c0_10, %c0_11] : memref<8x16xf32, #tpu.memory_space<vmem>>, vector<8x16xf32>
    %cst_12 = arith.constant dense<0.000000e+00> : vector<2x16xf32>
    %14 = tpu.matmul %12, %13, %cst_12 {dimension_numbers = #tpu.dot_dimension_numbers<[1], [0], [0], [1], [0, 0, 1, 1], [], []>} : vector<2x8xf32>, vector<8x16xf32>, vector<2x16xf32> -> vector<2x16xf32>
    %c0_13 = arith.constant 0 : index
    %c0_14 = arith.constant 0 : index
    %15 = vector.load %arg5[%c0_13, %c0_14] : memref<1x16xf32, #tpu.memory_space<vmem>>, vector<1x16xf32>
    %16 = vector.broadcast %15 : vector<1x16xf32> to vector<2x16xf32>
    %17 = arith.addf %14, %16 : vector<2x16xf32>
    %cst_15 = arith.constant 3.000000e+00 : f32
    %18 = vector.broadcast %cst_15 : f32 to vector<2x16xf32>
    %19 = arith.addf %17, %18 : vector<2x16xf32>
    %cst_16 = arith.constant 0.000000e+00 : f32
    %cst_17 = arith.constant 6.000000e+00 : f32
    %20 = vector.broadcast %cst_16 : f32 to vector<2x16xf32>
    %21 = arith.maximumf %20, %19 : vector<2x16xf32>
    %22 = vector.broadcast %cst_17 : f32 to vector<2x16xf32>
    %23 = arith.minimumf %22, %21 : vector<2x16xf32>
    %cst_18 = arith.constant 0.166666672 : f32
    %24 = vector.broadcast %cst_18 : f32 to vector<2x16xf32>
    %25 = arith.mulf %23, %24 : vector<2x16xf32>
    %26 = vector.shape_cast %25 : vector<2x16xf32> to vector<2x16x1xf32>
    %27 = vector.broadcast %26 : vector<2x16x1xf32> to vector<2x16x256xf32>
    %28 = arith.mulf %0, %27 : vector<2x16x256xf32>
    %c0_19 = arith.constant 0 : index
    %c0_20 = arith.constant 0 : index
    %c0_21 = arith.constant 0 : index
    %29 = vector.load %arg6[%c0_19, %c0_20, %c0_21] : memref<2x16x256xf32, #tpu.memory_space<vmem>>, vector<2x16x256xf32>
    tpu.vector_store %arg6[%c0_19, %c0_20, %c0_21], %28 {strides = array<i32>} : memref<2x16x256xf32, #tpu.memory_space<vmem>>, vector<2x16x256xf32>,
    return
  }
  func.func @transform_0(%arg0: i32) -> (i32, i32, i32) {
    %c0_i32 = arith.constant 0 : i32
    %c0_i32_0 = arith.constant 0 : i32
    %c0_i32_1 = arith.constant 0 : i32
    return %arg0, %c0_i32, %c0_i32_0 : i32, i32, i32
  }
  func.func @transform_1(%arg0: i32) -> (i32, i32) {
    %c0_i32 = arith.constant 0 : i32
    %c0_i32_0 = arith.constant 0 : i32
    %c0_i32_1 = arith.constant 0 : i32
    return %c0_i32, %c0_i32_0 : i32, i32
  }
  func.func @transform_2(%arg0: i32) -> (i32, i32) {
    %c0_i32 = arith.constant 0 : i32
    %c0_i32_0 = arith.constant 0 : i32
    %c0_i32_1 = arith.constant 0 : i32
    return %c0_i32, %c0_i32_0 : i32, i32
  }
  func.func @transform_3(%arg0: i32) -> (i32, i32) {
    %c0_i32 = arith.constant 0 : i32
    %c0_i32_0 = arith.constant 0 : i32
    %c0_i32_1 = arith.constant 0 : i32
    return %c0_i32, %c0_i32_0 : i32, i32
  }
  func.func @transform_4(%arg0: i32) -> (i32, i32) {
    %c0_i32 = arith.constant 0 : i32
    %c0_i32_0 = arith.constant 0 : i32
    %c0_i32_1 = arith.constant 0 : i32
    return %c0_i32, %c0_i32_0 : i32, i32
  }
  func.func @transform_5(%arg0: i32) -> (i32, i32, i32) {
    %c0_i32 = arith.constant 0 : i32
    %c0_i32_0 = arith.constant 0 : i32
    %c0_i32_1 = arith.constant 0 : i32
    return %arg0, %c0_i32, %c0_i32_0 : i32, i32, i32
  }
}

</mosaic_0001>

<llo_original>
// kernel: tpu_custom_call.1
$region0: #{tpu_custom_call.1}
  #allocation0 [shape = 'u32[]', space=smem, size = 0x4, offset = 0x4, fixed_abs, tag = 'smem constant byte address 0x4 - core index']
  #allocation1 [shape = 'u32[144,128]{1,0:T(1,128)}', space=vmem, size = 0x12000, scoped, tag = 'internal scratch']
  %s0 = inlined_call_operand.hbm [shape: f32[2,16,256], index: 0, kind: input, shape index: {}]
  %s1 = inlined_call_operand.vmem [shape: f32[16,8], index: 1, kind: input, shape index: {}]
  %s2 = inlined_call_operand.vmem [shape: f32[1,8], index: 2, kind: input, shape index: {}]
  %s3 = inlined_call_operand.vmem [shape: f32[8,16], index: 3, kind: input, shape index: {}]
  %s4 = inlined_call_operand.vmem [shape: f32[1,16], index: 4, kind: input, shape index: {}]
  %s5 = inlined_call_operand.hbm [shape: f32[2,16,256], index: 5, kind: output, shape index: {}]
  %s6 = sld [smem:[#allocation0]]
  $region34: #{tpu_custom_call.1} parent=0
    _
  %s8 = ssub.s32 1, %s6
  %s9 = scalar_select 0, %s8, %s6
  $region1: #{tpu_custom_call.1} parent=0
    #allocation2 [shape = 'u8[32768]{0}', space=vmem, size = 0x8000, scoped, tag = 'input window, operand 0, single buffered']
    #allocation3 [shape = 's32[1]{0}', space=sflag, size = 0x4, scoped, tag = 'scoped memory for tpu_custom_call.1']
    #allocation4 [shape = 's32[1]{0}', space=sflag, size = 0x4, scoped, tag = 'scoped memory for tpu_custom_call.1']
    #allocation5 [shape = 'u8[32768]{0}', space=vmem, size = 0x8000, scoped, tag = 'output window, operand 0, single buffered']
    %10 = vsyncpa [#allocation3], 0
    %11 = vsyncpa [#allocation4], 0
    // Predicated region
    $region2: #{tpu_custom_call.1} parent=1 // pred_check
      _
    $region3: #{tpu_custom_call.1} parent=1 // pred_check_branch
      %13 = sbr.rel (0) target = $region5
    $region4: #{tpu_custom_call.1} parent=1 // pred_region
      %s15 = ssub.s32 1024, 1024
      %16 = vsyncadd [#allocation3], %s15
      %s17 = sshll.u32 [#allocation2], 4
      %s18 = int_to_ptr.vmem [resolvable:$true] %s17
      %23 = dma.hbm_to_vmem [thread:$0]  %s0, 1024, %s18, [#allocation3], 256, 256, 16
    $region5: #{tpu_custom_call.1} parent=1 // pred_fallthru
      _
    // Predicated region
    $region6: #{tpu_custom_call.1} parent=1 // pred_check
      _
    $region7: #{tpu_custom_call.1} parent=1 // pred_check_branch
      %25 = sbr.rel (0) target = $region9
    $region8: #{tpu_custom_call.1} parent=1 // pred_region
      _
    $region9: #{tpu_custom_call.1} parent=1 // pred_fallthru
      _
    // Predicated region
    $region10: #{tpu_custom_call.1} parent=1 // pred_check
      _
    $region11: #{tpu_custom_call.1} parent=1 // pred_check_branch
      %27 = sbr.rel (0) target = $region13
    $region12: #{tpu_custom_call.1} parent=1 // pred_region
      _
    $region13: #{tpu_custom_call.1} parent=1 // pred_fallthru
      _
    // Predicated region
    $region14: #{tpu_custom_call.1} parent=1 // pred_check
      _
    $region15: #{tpu_custom_call.1} parent=1 // pred_check_branch
      %29 = sbr.rel (0) target = $region17
    $region16: #{tpu_custom_call.1} parent=1 // pred_region
      _
    $region17: #{tpu_custom_call.1} parent=1 // pred_fallthru
      _
    // Predicated region
    $region18: #{tpu_custom_call.1} parent=1 // pred_check
      _
    $region19: #{tpu_custom_call.1} parent=1 // pred_check_branch
      %31 = sbr.rel (0) target = $region21
    $region20: #{tpu_custom_call.1} parent=1 // pred_region
      _
    $region21: #{tpu_custom_call.1} parent=1 // pred_fallthru
      _
    // Predicated region
    $region22: #{tpu_custom_call.1} parent=1 // pred_check
      _
    $region23: #{tpu_custom_call.1} parent=1 // pred_check_branch
      %33 = sbr.rel (0) target = $region25
    $region24: #{tpu_custom_call.1} parent=1 // pred_region
      %34 = dma.done [#allocation3], 1024
    $region25: #{tpu_custom_call.1} parent=1 // pred_fallthru
      _
    %v35 = vld [vmem:[#allocation2] sm:$0xff]
    %v36 = vld [vmem:[#allocation2 + $0x8] sm:$0xff]
    %v37 = vld [vmem:[#allocation2 + $0x10] sm:$0xff]
    %v38 = vld [vmem:[#allocation2 + $0x18] sm:$0xff]
    %v39 = vld [vmem:[#allocation2 + $0x20] sm:$0xff]
    %v40 = vld [vmem:[#allocation2 + $0x28] sm:$0xff]
    %v41 = vld [vmem:[#allocation2 + $0x30] sm:$0xff]
    %v42 = vld [vmem:[#allocation2 + $0x38] sm:$0xff]
    %v43 = vadd.f32 %v35, %v36
    %44 = vadd.xlane.f32.xlu0 %v43
    %v45 = vpop.xlane.xlu0 %44
    %v46 = vadd.f32 %v37, %v38
    %47 = vadd.xlane.f32.xlu0 %v46
    %v48 = vpop.xlane.xlu0 %47
    %v49 = vadd.f32 %v39, %v40
    %50 = vadd.xlane.f32.xlu0 %v49
    %v51 = vpop.xlane.xlu0 %50
    %v52 = vadd.f32 %v41, %v42
    %53 = vadd.xlane.f32.xlu0 %v52
    %v54 = vpop.xlane.xlu0 %53
    %v55 = vmul.f32 %v45, 0.00390625
    %v56 = vmul.f32 %v48, 0.00390625
    %v57 = vmul.f32 %v51, 0.00390625
    %v58 = vmul.f32 %v54, 0.00390625
    %v59 = vld [vmem:[%s1] sm:$0xff]
    %v60 = vld [vmem:[%s1 + $0x8] sm:$0xff]
    %v61 = vld [vmem:[%s2] sm:$0x1]
    %v63 = vlaneseq
    %v64 = vshrl.u32 %v63, 7
    %v65 = vsub.s32 0, %v64
    %v66 = vrot.slane %v61, %v65
    %v72 = vlaneseq
    %v73 = vand.u32 %v72, 127
    %v74 = vlaneseq
    %v75 = vshrl.u32 %v74, 7
    %v76 = vsub.s32 %v73, %v75
    %v77 = vrot.slane %v55, %v76
    %v78 = vadd.s32 %v73, 4294967288
    %v79 = vlaneseq
    %v80 = vshrl.u32 %v79, 7
    %v81 = vsub.s32 %v78, %v80
    %v82 = vrot.slane %v56, %v81
    %vm83 = vcmask 130112
    %v84 = vsel %vm83, %v82, %v77
    %v85 = vlaneseq
    %v86 = vshrl.u32 %v85, 7
    %v87 = vsub.s32 %v73, %v86
    %v88 = vrot.slane %v57, %v87
    %v89 = vlaneseq
    %v90 = vshrl.u32 %v89, 7
    %v91 = vsub.s32 %v78, %v90
    %v92 = vrot.slane %v58, %v91
    %v93 = vsel %vm83, %v92, %v88
    %vm94 = vcmask 1041409
    %v95 = vsel %vm94, %v93, %v84
    %vm96 = vcmask 130048
    %v97 = vsel %vm96, %v95, 0
    %99 = vmatprep.subr.mxu0 0.0
    %100 = vmatpush1.msra.mxu0 %v59
    %101 = vmatprep.subr.mxu0 0.0
    %102 = vmatpush1.msra.mxu0 %v60
    %103 = vmatprep.subr.mxu0 0.0
    %104 = vmatpush1.msra.mxu0 0.0
    %105 = vmatprep.subr.mxu0 0.0
    %106 = vmatpush1.msra.mxu0 0.0
    %107 = vmatprep.subr.mxu0 0.0
    %108 = vmatpush1.msra.mxu0 0.0
    %109 = vmatprep.subr.mxu0 0.0
    %110 = vmatpush1.msra.mxu0 0.0
    %111 = vmatprep.subr.mxu0 0.0
    %112 = vmatpush1.msra.mxu0 0.0
    %113 = vmatprep.subr.mxu0 0.0
    %114 = vmatpush1.msra.mxu0 0.0
    %115 = vmatprep.subr.mxu0 0.0
    %116 = vmatpush1.msra.mxu0 0.0
    %117 = vmatprep.subr.mxu0 0.0
    %118 = vmatpush1.msra.mxu0 0.0
    %119 = vmatprep.subr.mxu0 0.0
    %120 = vmatpush1.msra.mxu0 0.0
    %121 = vmatprep.subr.mxu0 0.0
    %122 = vmatpush1.msra.mxu0 0.0
    %123 = vmatprep.subr.mxu0 0.0
    %124 = vmatpush1.msra.mxu0 0.0
    %125 = vmatprep.subr.mxu0 0.0
    %126 = vmatpush1.msra.mxu0 0.0
    %127 = vmatprep.subr.mxu0 0.0
    %128 = vmatpush1.msra.mxu0 0.0
    %129 = vmatprep.subr.mxu0 0.0
    %130 = vmatpush1.msra.mxu0 0.0
    %131 = vmatprep.subr.mxu0 0.0
    %132 = vmatpush1.msra.mxu0 0.0
    %133 = vmatprep.subr.mxu0 0.0
    %134 = vmatpush1.msra.mxu0 0.0
    %135 = vmatprep.subr.mxu0 0.0
    %136 = vmatpush1.msra.mxu0 0.0
    %137 = vmatprep.subr.mxu0 0.0
    %138 = vmatpush1.msra.mxu0 0.0
    %139 = vmatprep.subr.mxu0 0.0
    %140 = vmatpush1.msra.mxu0 0.0
    %141 = vmatprep.subr.mxu0 0.0
    %142 = vmatpush1.msra.mxu0 0.0
    %143 = vmatprep.subr.mxu0 0.0
    %144 = vmatpush1.msra.mxu0 0.0
    %145 = vmatprep.subr.mxu0 0.0
    %146 = vmatpush1.msra.mxu0 0.0
    %147 = vmatprep.subr.mxu0 0.0
    %148 = vmatpush1.msra.mxu0 0.0
    %149 = vmatprep.subr.mxu0 0.0
    %150 = vmatpush1.msra.mxu0 0.0
    %151 = vmatprep.subr.mxu0 0.0
    %152 = vmatpush1.msra.mxu0 0.0
    %153 = vmatprep.subr.mxu0 0.0
    %154 = vmatpush1.msra.mxu0 0.0
    %155 = vmatprep.subr.mxu0 0.0
    %156 = vmatpush1.msra.mxu0 0.0
    %157 = vmatprep.subr.mxu0 0.0
    %158 = vmatpush1.msra.mxu0 0.0
    %159 = vmatprep.subr.mxu0 0.0
    %160 = vmatpush1.msra.mxu0 0.0
    %161 = vmatprep.subr.mxu0 0.0
    %162 = vmatpush1.msra.mxu0 0.0
    %163 = vmatprep.mubr.f32.mxu0 0.0
    %164 = vmatmul.mubr.f32.gmra.mrb[0].mxu0 %v97
    %v165 = vpop.f32.mrb[0].mxu0
    %v166 = vadd.f32 %v66, %v165
    %v167 = vpop.f32.mrb[0].mxu0
    %168 = vdwg.mxu0
    %v169 = vmax.f32 %v166, 0.0
    %v170 = vmin.f32 %v169, 6.0
    %v171 = vld [vmem:[%s3] sm:$0xff]
    %v172 = vld [vmem:[%s4] sm:$0x1]
    %v174 = vlaneseq
    %v175 = vshrl.u32 %v174, 7
    %v176 = vsub.s32 0, %v175
    %v177 = vrot.slane %v172, %v176
    %vm179 = vcmask 64512
    %v181 = vsel %vm179, %v170, 0
    %183 = vmatprep.subr.mxu0 0.0
    %184 = vmatpush1.msra.mxu0 %v171
    %185 = vmatprep.subr.mxu0 0.0
    %186 = vmatpush1.msra.mxu0 0.0
    %187 = vmatprep.subr.mxu0 0.0
    %188 = vmatpush1.msra.mxu0 0.0
    %189 = vmatprep.subr.mxu0 0.0
    %190 = vmatpush1.msra.mxu0 0.0
    %191 = vmatprep.subr.mxu0 0.0
    %192 = vmatpush1.msra.mxu0 0.0
    %193 = vmatprep.subr.mxu0 0.0
    %194 = vmatpush1.msra.mxu0 0.0
    %195 = vmatprep.subr.mxu0 0.0
    %196 = vmatpush1.msra.mxu0 0.0
    %197 = vmatprep.subr.mxu0 0.0
    %198 = vmatpush1.msra.mxu0 0.0
    %199 = vmatprep.subr.mxu0 0.0
    %200 = vmatpush1.msra.mxu0 0.0
    %201 = vmatprep.subr.mxu0 0.0
    %202 = vmatpush1.msra.mxu0 0.0
    %203 = vmatprep.subr.mxu0 0.0
    %204 = vmatpush1.msra.mxu0 0.0
    %205 = vmatprep.subr.mxu0 0.0
    %206 = vmatpush1.msra.mxu0 0.0
    %207 = vmatprep.subr.mxu0 0.0
    %208 = vmatpush1.msra.mxu0 0.0
    %209 = vmatprep.subr.mxu0 0.0
    %210 = vmatpush1.msra.mxu0 0.0
    %211 = vmatprep.subr.mxu0 0.0
    %212 = vmatpush1.msra.mxu0 0.0
    %213 = vmatprep.subr.mxu0 0.0
    %214 = vmatpush1.msra.mxu0 0.0
    %215 = vmatprep.subr.mxu0 0.0
    %216 = vmatpush1.msra.mxu0 0.0
    %217 = vmatprep.subr.mxu0 0.0
    %218 = vmatpush1.msra.mxu0 0.0
    %219 = vmatprep.subr.mxu0 0.0
    %220 = vmatpush1.msra.mxu0 0.0
    %221 = vmatprep.subr.mxu0 0.0
    %222 = vmatpush1.msra.mxu0 0.0
    %223 = vmatprep.subr.mxu0 0.0
    %224 = vmatpush1.msra.mxu0 0.0
    %225 = vmatprep.subr.mxu0 0.0
    %226 = vmatpush1.msra.mxu0 0.0
    %227 = vmatprep.subr.mxu0 0.0
    %228 = vmatpush1.msra.mxu0 0.0
    %229 = vmatprep.subr.mxu0 0.0
    %230 = vmatpush1.msra.mxu0 0.0
    %231 = vmatprep.subr.mxu0 0.0
    %232 = vmatpush1.msra.mxu0 0.0
    %233 = vmatprep.subr.mxu0 0.0
    %234 = vmatpush1.msra.mxu0 0.0
    %235 = vmatprep.subr.mxu0 0.0
    %236 = vmatpush1.msra.mxu0 0.0
    %237 = vmatprep.subr.mxu0 0.0
    %238 = vmatpush1.msra.mxu0 0.0
    %239 = vmatprep.subr.mxu0 0.0
    %240 = vmatpush1.msra.mxu0 0.0
    %241 = vmatprep.subr.mxu0 0.0
    %242 = vmatpush1.msra.mxu0 0.0
    %243 = vmatprep.subr.mxu0 0.0
    %244 = vmatpush1.msra.mxu0 0.0
    %245 = vmatprep.subr.mxu0 0.0
    %246 = vmatpush1.msra.mxu0 0.0
    %247 = vmatprep.mubr.f32.mxu0 0.0
    %248 = vmatmul.mubr.f32.gmra.mrb[0].mxu0 %v181
    %v249 = vpop.f32.mrb[0].mxu0
    %v250 = vadd.f32 %v177, %v249
    %v251 = vpop.f32.mrb[0].mxu0
    %252 = vdwg.mxu0
    %v253 = vadd.f32 %v250, 3.0
    %v254 = vmax.f32 %v253, 0.0
    %v255 = vmin.f32 %v254, 6.0
    %v256 = vmul.f32 %v255, 0.16666667
    %v257 = vlaneseq
    %v258 = vshrl.u32 %v257, 7
    %v259 = vsub.s32 0, %v258
    %v260 = vrot.slane %v256, %v259
    %262 = vbcast.lane.b32.xlu0 %v260, 256
    %v263 = vpop.permute.xlu0 %262
    %s265 = sor.u32 256, 8
    %266 = vbcast.lane.b32.xlu0 %v260, %s265
    %v267 = vpop.permute.xlu0 %266
    %v268 = vlaneseq
    %v269 = vshrl.u32 %v268, 7
    %v270 = vsub.s32 1, %v269
    %v271 = vrot.slane %v256, %v270
    %273 = vbcast.lane.b32.xlu0 %v271, 256
    %v274 = vpop.permute.xlu0 %273
    %s276 = sor.u32 256, 8
    %277 = vbcast.lane.b32.xlu0 %v271, %s276
    %v278 = vpop.permute.xlu0 %277
    %v279 = vmul.f32 %v35, %v263
    %v280 = vmul.f32 %v36, %v263
    %v281 = vmul.f32 %v37, %v267
    %v282 = vmul.f32 %v38, %v267
    %v283 = vmul.f32 %v39, %v274
    %v284 = vmul.f32 %v40, %v274
    %v285 = vmul.f32 %v41, %v278
    %v286 = vmul.f32 %v42, %v278
    %287 = vst [vmem:[#allocation5] sm:$0xff] %v279
    %288 = vst [vmem:[#allocation5 + $0x8] sm:$0xff] %v280
    %289 = vst [vmem:[#allocation5 + $0x10] sm:$0xff] %v281
    %290 = vst [vmem:[#allocation5 + $0x18] sm:$0xff] %v282
    %291 = vst [vmem:[#allocation5 + $0x20] sm:$0xff] %v283
    %292 = vst [vmem:[#allocation5 + $0x28] sm:$0xff] %v284
    %293 = vst [vmem:[#allocation5 + $0x30] sm:$0xff] %v285
    %294 = vst [vmem:[#allocation5 + $0x38] sm:$0xff] %v286
    // Predicated region
    $region26: #{tpu_custom_call.1} parent=1 // pred_check
      _
    $region27: #{tpu_custom_call.1} parent=1 // pred_check_branch
      %296 = sbr.rel (0) target = $region29
    $region28: #{tpu_custom_call.1} parent=1 // pred_region
      %s298 = ssub.s32 1024, 1024
      %299 = vsyncadd [#allocation4], %s298
      %s300 = sshll.u32 [#allocation5], 4
      %s301 = int_to_ptr.vmem [resolvable:$true] %s300
      %306 = dma.vmem_to_hbm [thread:$0]  %s301, 1024, %s5, [#allocation4], 256, 256, 16
    $region29: #{tpu_custom_call.1} parent=1 // pred_fallthru
      _
    // Predicated region
    $region30: #{tpu_custom_call.1} parent=1 // pred_check
      _
    $region31: #{tpu_custom_call.1} parent=1 // pred_check_branch
      %308 = sbr.rel (0) target = $region33
    $region32: #{tpu_custom_call.1} parent=1 // pred_region
      %309 = dma.done [#allocation4], 1024
    $region33: #{tpu_custom_call.1} parent=1 // pred_fallthru
      _
    %310 = vsyncpa [#allocation3], 1
    %311 = vsyncpa [#allocation4], 1

</llo_original>
